<compile_context>
chip_gen: v7x
topology: tpu7x:2x2x1
jax: 0.10.0
libtpu: 0.0.40
codegen_flags: <defaults>
</compile_context>

<pallas_src>
import functools

import jax
import jax.numpy as jnp
from jax.experimental import pallas as pl
from jax.experimental.pallas import tpu as pltpu


def _row_losses(x, tgt):
    """Per-row loss term: lse_i - x[i, target_i] == -log_softmax(x)[i, target_i]."""
    tm, c = x.shape
    m = jnp.max(x, axis=1, keepdims=True)                               # (TM, 1)
    lse = jnp.log(jnp.sum(jnp.exp(x - m), axis=1, keepdims=True)) + m   # (TM, 1)
    col = jax.lax.broadcasted_iota(jnp.int32, (tm, c), 1)
    x_tgt = jnp.sum(jnp.where(col == tgt, x, 0.0), axis=1, keepdims=True)
    return lse - x_tgt                                                  # (TM, 1)


def _mask_rows(vals, n_rows):
    # Zero out rows that belong to the ragged (padded) last tile.
    tm = vals.shape[0]
    row = pl.program_id(0) * tm + jax.lax.broadcasted_iota(jnp.int32, (tm, 1), 0)
    return jnp.where(row < n_rows, vals, 0.0)


def _loss_kernel_unweighted(x_ref, tgt_ref, o_ref, *, n_rows):
    x = x_ref[...].astype(jnp.float32)
    row_loss = _mask_rows(_row_losses(x, tgt_ref[...]), n_rows)
    o_ref[...] = jnp.full(o_ref.shape, jnp.sum(row_loss), dtype=jnp.float32)


def _loss_kernel_weighted(x_ref, tgt_ref, w_ref, o_ref, *, n_rows):
    x = x_ref[...].astype(jnp.float32)
    row_loss = w_ref[...].astype(jnp.float32) * _row_losses(x, tgt_ref[...])
    row_loss = _mask_rows(row_loss, n_rows)
    o_ref[...] = jnp.full(o_ref.shape, jnp.sum(row_loss), dtype=jnp.float32)


def _pick_tile_rows(n, c):
    # ~8 MiB per x buffer -> 2x double-buffered tiles stay far below the 32 MiB
    # scoped VMEM limit even on v7x.
    budget_bytes = 8 * 1024 * 1024
    tm = budget_bytes // (c * 4)
    tm = max(8, min(1024, tm))
    tm = (tm // 8) * 8
    if tm >= n:
        return n          # single block; block == full array dim is always legal
    return tm


def classification_loss(x, target, nclass, weight=None, *, tile_rows=None):
    """x: (N, nclass) float, target: (N,) int, weight: optional (N,) float."""
    n = x.shape[0]
    assert x.shape == (n, nclass)
    tm = tile_rows if tile_rows is not None else _pick_tile_rows(n, nclass)
    num_blocks = pl.cdiv(n, tm)

    tgt2d = target.astype(jnp.int32).reshape(n, 1)

    x_spec = pl.BlockSpec((tm, nclass), lambda i: (i, 0))
    t_spec = pl.BlockSpec((tm, 1), lambda i: (i, 0))
    # Lane-dense partial-sum output: one (8, 128) tile per grid step.
    out_spec = pl.BlockSpec((1, 8, 128), lambda i: (i, 0, 0))
    out_shape = jax.ShapeDtypeStruct((num_blocks, 8, 128), jnp.float32)
    cparams = pltpu.CompilerParams(
        dimension_semantics=("parallel",),
        vmem_limit_bytes=32 * 1024 * 1024,
    )

    if weight is None:
        partials = pl.pallas_call(
            functools.partial(_loss_kernel_unweighted, n_rows=n),
            out_shape=out_shape,
            grid=(num_blocks,),
            in_specs=[x_spec, t_spec],
            out_specs=out_spec,
            compiler_params=cparams,
        )(x, tgt2d)
    else:
        w2d = weight.astype(jnp.float32).reshape(n, 1)
        w_spec = pl.BlockSpec((tm, 1), lambda i: (i, 0))
        partials = pl.pallas_call(
            functools.partial(_loss_kernel_weighted, n_rows=n),
            out_shape=out_shape,
            grid=(num_blocks,),
            in_specs=[x_spec, t_spec, w_spec],
            out_specs=out_spec,
            compiler_params=cparams,
        )(x, tgt2d, w2d)

    inv = 1.0 / float(n * nclass)   # compile-time constant; no runtime divide
    return jnp.sum(partials[:, 0, 0]) * jnp.float32(inv)


def _reference_loss(x, target, nclass, weight=None):
    # Pure-JAX reference mirroring the PyTorch forward.
    n = x.shape[0]
    logp = jax.nn.log_softmax(x.astype(jnp.float32), axis=1)
    vals = jnp.ones((n,), jnp.float32) if weight is None else weight.astype(jnp.float32)
    one_hot = jnp.zeros((n, nclass), jnp.float32).at[jnp.arange(n), target].set(vals)
    return -jnp.mean(one_hot * logp)


if __name__ == "__main__":
    key = jax.random.PRNGKey(0)
    N, NCLASS = 8, 32
    kx, kt, kw = jax.random.split(key, 3)
    x = jax.random.normal(kx, (N, NCLASS), dtype=jnp.float32)
    target = jax.random.randint(kt, (N,), 0, NCLASS, dtype=jnp.int32)

    # weight=None path (PyTorch default): scatter value 1.
    loss = jax.block_until_ready(classification_loss(x, target, NCLASS))
    ref = _reference_loss(x, target, NCLASS)
    assert jnp.allclose(loss, ref, atol=1e-5, rtol=1e-5), (loss, ref)

    # weighted path: scatter src=weight.
    weight = jax.random.uniform(kw, (N,), dtype=jnp.float32)
    loss_w = jax.block_until_ready(
        classification_loss(x, target, NCLASS, weight=weight))
    ref_w = _reference_loss(x, target, NCLASS, weight=weight)
    assert jnp.allclose(loss_w, ref_w, atol=1e-5, rtol=1e-5), (loss_w, ref_w)

    # multi-block + ragged-last-tile path (exercises row masking and the parallel
    # partial-sum reduction) at a still-small shape.
    N2 = 20
    kx2, kt2 = jax.random.split(kw, 2)
    x2 = jax.random.normal(kx2, (N2, NCLASS), dtype=jnp.float32)
    t2 = jax.random.randint(kt2, (N2,), 0, NCLASS, dtype=jnp.int32)
    loss2 = jax.block_until_ready(
        classification_loss(x2, t2, NCLASS, tile_rows=8))
    ref2 = _reference_loss(x2, t2, NCLASS)
    assert jnp.allclose(loss2, ref2, atol=1e-5, rtol=1e-5), (loss2, ref2)

    print("KERNEL_OK")
</pallas_src>

<mosaic_0001>
module attributes {stable_mosaic.version = 11 : i64} {
  func.func @_loss_kernel_unweighted(%arg0: i32, %arg1: memref<8x32xf32, #tpu.memory_space<vmem>>, %arg2: memref<8x1xi32, #tpu.memory_space<vmem>>, %arg3: memref<1x8x128xf32, #tpu.memory_space<vmem>>) attributes {dimension_semantics = [#tpu.dimension_semantics<parallel>], iteration_bounds = array<i64: 1>, scalar_prefetch = 0 : i64, scratch_operands = 0 : i64, tpu.core_type = #tpu.core_type<tc>, window_params = [{transform_indices = @transform_0, window_bounds = array<i64: 8, 32>}, {transform_indices = @transform_1, window_bounds = array<i64: 8, 1>}, {transform_indices = @transform_2, window_bounds = array<i64: 1, 8, 128>}]} {
    %c0 = arith.constant 0 : index
    %c0_0 = arith.constant 0 : index
    %0 = vector.load %arg1[%c0, %c0_0] : memref<8x32xf32, #tpu.memory_space<vmem>>, vector<8x32xf32>
    %c0_1 = arith.constant 0 : index
    %c0_2 = arith.constant 0 : index
    %1 = vector.load %arg2[%c0_1, %c0_2] : memref<8x1xi32, #tpu.memory_space<vmem>>, vector<8x1xi32>
    %cst = arith.constant dense<0xFF800000> : vector<8xf32>
    %2 = vector.multi_reduction <maximumf>, %0, %cst [1] : vector<8x32xf32> to vector<8xf32>
    %3 = vector.shape_cast %2 : vector<8xf32> to vector<8x1xf32>
    %4 = vector.broadcast %3 : vector<8x1xf32> to vector<8x32xf32>
    %5 = arith.subf %0, %4 : vector<8x32xf32>
    %6 = math.exp %5 : vector<8x32xf32>
    %cst_3 = arith.constant dense<0.000000e+00> : vector<8xf32>
    %7 = vector.multi_reduction <add>, %6, %cst_3 [1] : vector<8x32xf32> to vector<8xf32>
    %8 = vector.shape_cast %7 : vector<8xf32> to vector<8x1xf32>
    %9 = math.log %8 : vector<8x1xf32>
    %10 = arith.addf %9, %3 : vector<8x1xf32>
    %11 = tpu.iota {dimensions = array<i32: 1>} : vector<8x32xi32>
    %12 = vector.broadcast %1 : vector<8x1xi32> to vector<8x32xi32>
    %13 = arith.cmpi eq, %11, %12 : vector<8x32xi32>
    %cst_4 = arith.constant 0.000000e+00 : f32
    %14 = vector.broadcast %cst_4 : f32 to vector<8x32xf32>
    %15 = arith.select %13, %0, %14 : vector<8x32xi1>, vector<8x32xf32>
    %cst_5 = arith.constant dense<0.000000e+00> : vector<8xf32>
    %16 = vector.multi_reduction <add>, %15, %cst_5 [1] : vector<8x32xf32> to vector<8xf32>
    %17 = vector.shape_cast %16 : vector<8xf32> to vector<8x1xf32>
    %18 = arith.subf %10, %17 : vector<8x1xf32>
    %c8_i32 = arith.constant 8 : i32
    %19 = arith.muli %arg0, %c8_i32 : i32
    %20 = tpu.iota {dimensions = array<i32: 0>} : vector<8x1xi32>
    %21 = vector.broadcast %19 : i32 to vector<8x1xi32>
    %22 = arith.addi %21, %20 : vector<8x1xi32>
    %c8_i32_6 = arith.constant 8 : i32
    %23 = vector.broadcast %c8_i32_6 : i32 to vector<8x1xi32>
    %24 = arith.cmpi slt, %22, %23 : vector<8x1xi32>
    %cst_7 = arith.constant 0.000000e+00 : f32
    %25 = vector.broadcast %cst_7 : f32 to vector<8x1xf32>
    %26 = arith.select %24, %18, %25 : vector<8x1xi1>, vector<8x1xf32>
    %27 = vector.shape_cast %26 : vector<8x1xf32> to vector<1x8x1xf32>
    %cst_8 = arith.constant dense<0.000000e+00> : vector<1xf32>
    %28 = vector.multi_reduction <add>, %27, %cst_8 [1, 2] : vector<1x8x1xf32> to vector<1xf32>
    %29 = vector.shape_cast %28 : vector<1xf32> to vector<1x1x1xf32>
    %30 = vector.extract %29[0, 0, 0] : f32 from vector<1x1x1xf32>
    %31 = vector.broadcast %30 : f32 to vector<1x8x128xf32>
    %c0_9 = arith.constant 0 : index
    %c0_10 = arith.constant 0 : index
    %c0_11 = arith.constant 0 : index
    %32 = vector.load %arg3[%c0_9, %c0_10, %c0_11] : memref<1x8x128xf32, #tpu.memory_space<vmem>>, vector<1x8x128xf32>
    tpu.vector_store %arg3[%c0_9, %c0_10, %c0_11], %31 {strides = array<i32>} : memref<1x8x128xf32, #tpu.memory_space<vmem>>, vector<1x8x128xf32>,
    return
  }
  func.func @transform_0(%arg0: i32) -> (i32, i32) {
    %c0_i32 = arith.constant 0 : i32
    %c0_i32_0 = arith.constant 0 : i32
    return %arg0, %c0_i32 : i32, i32
  }
  func.func @transform_1(%arg0: i32) -> (i32, i32) {
    %c0_i32 = arith.constant 0 : i32
    %c0_i32_0 = arith.constant 0 : i32
    return %arg0, %c0_i32 : i32, i32
  }
  func.func @transform_2(%arg0: i32) -> (i32, i32, i32) {
    %c0_i32 = arith.constant 0 : i32
    %c0_i32_0 = arith.constant 0 : i32
    %c0_i32_1 = arith.constant 0 : i32
    return %arg0, %c0_i32, %c0_i32_0 : i32, i32, i32
  }
}

</mosaic_0001>

<llo_original>
// kernel: tpu_custom_call.1
$region0: #{tpu_custom_call.1}
  #allocation0 [shape = 'u32[]', space=smem, size = 0x4, offset = 0x4, fixed_abs, tag = 'smem constant byte address 0x4 - core index']
  #allocation1 [shape = 'u32[144,128]{1,0:T(1,128)}', space=vmem, size = 0x12000, scoped, tag = 'internal scratch']
  %s0 = inlined_call_operand.vmem [shape: f32[8,32], index: 0, kind: input, shape index: {}]
  %s1 = inlined_call_operand.vmem [shape: s32[8,1], index: 1, kind: input, shape index: {}]
  %s2 = inlined_call_operand.hbm [shape: f32[1,8,128], index: 2, kind: output, shape index: {}]
  %s3 = sld [smem:[#allocation0]]
  $region18: #{tpu_custom_call.1} parent=0
    _
  %s5 = ssub.s32 1, %s3
  %s6 = scalar_select 0, %s5, %s3
  $region1: #{tpu_custom_call.1} parent=0
    #allocation2 [shape = 'u8[4096]{0}', space=vmem, size = 0x1000, scoped, tag = 'output window, operand 0, single buffered']
    #allocation3 [shape = 's32[1]{0}', space=sflag, size = 0x4, scoped, tag = 'scoped memory for tpu_custom_call.1']
    %7 = vsyncpa [#allocation3], 0
    // Predicated region
    $region2: #{tpu_custom_call.1} parent=1 // pred_check
      _
    $region3: #{tpu_custom_call.1} parent=1 // pred_check_branch
      %9 = sbr.rel (0) target = $region5
    $region4: #{tpu_custom_call.1} parent=1 // pred_region
      _
    $region5: #{tpu_custom_call.1} parent=1 // pred_fallthru
      _
    // Predicated region
    $region6: #{tpu_custom_call.1} parent=1 // pred_check
      _
    $region7: #{tpu_custom_call.1} parent=1 // pred_check_branch
      %11 = sbr.rel (0) target = $region9
    $region8: #{tpu_custom_call.1} parent=1 // pred_region
      _
    $region9: #{tpu_custom_call.1} parent=1 // pred_fallthru
      _
    %v12 = vld [vmem:[%s0] sm:$0xff]
    %v13 = vld [vmem:[%s1] sm:$0xff]
    %vm14 = vcmask 261120
    %v15 = vsel %vm14, %v12, -inf
    %16 = vmax.xlane.f32.xlu0 %v15
    %v17 = vpop.xlane.xlu0 %16
    %v18 = vsub.f32 %v12, %v17
    %v19 = vmul.f32 %v18, 1.442695
    %v20 = vpow.pop %v19
    %v21 = vsel %vm14, %v20, 0.0
    %22 = vadd.xlane.f32.xlu0 %v21
    %v23 = vpop.xlane.xlu0 %22
    %v24 = vlog2.pop %v23
    %v25 = vmul.f32 %v24, 0.6931472
    %v26 = vadd.f32 %v25, %v17
    %v27 = vlaneseq
    %v28 = vand.u32 %v27, 127
    %29 = vset.pattern.permute.xlu0 0
    %30 = vperm.xlu0 %29, %v13
    %v31 = vpop.permute.xlu0 %30
    %vm32 = vcmp.eq.s32.totalorder %v28, %v31
    %v33 = vsel %vm32, %v12, 0.0
    %v34 = vsel %vm14, %v33, 0.0
    %35 = vadd.xlane.f32.xlu0 %v34
    %v36 = vpop.xlane.xlu0 %35
    %v37 = vsub.f32 %v26, %v36
    %s38 = smul.u32 0, 8
    %v39 = vlaneseq
    %v40 = vshrl.u32 %v39, 7
    %v41 = vstv %s38
    %v42 = vadd.s32 %v41, %v40
    %vm43 = vcmp.lt.s32.totalorder %v42, 8
    %v44 = vsel %vm43, %v37, 0.0
    %vm45 = vcmask 7168
    %v46 = vsel %vm45, %v44, 0.0
    %47 = vadd.xlane.f32.xlu0 %v46
    %v48 = vpop.xlane.xlu0 %47
    %v49 = vrot.slane %v48, 4
    %v50 = vadd.f32 %v48, %v49
    %v51 = vrot.slane %v50, 2
    %v52 = vadd.f32 %v50, %v51
    %v53 = vrot.slane %v52, 1
    %v54 = vadd.f32 %v52, %v53
    %s55 = vtos %v54
    %v56 = vstv %s55
    %57 = vst [vmem:[#allocation2] sm:$0xff] %v56
    // Predicated region
    $region10: #{tpu_custom_call.1} parent=1 // pred_check
      _
    $region11: #{tpu_custom_call.1} parent=1 // pred_check_branch
      %59 = sbr.rel (0) target = $region13
    $region12: #{tpu_custom_call.1} parent=1 // pred_region
      %s61 = ssub.s32 128, 128
      %62 = vsyncadd [#allocation3], %s61
      %s64 = sshll.u32 [#allocation2], 4
      %s65 = int_to_ptr.vmem [resolvable:$true] %s64
      %67 = dma.vmem_to_hbm [thread:$0]  %s65, 128, %s2, [#allocation3]
    $region13: #{tpu_custom_call.1} parent=1 // pred_fallthru
      _
    // Predicated region
    $region14: #{tpu_custom_call.1} parent=1 // pred_check
      _
    $region15: #{tpu_custom_call.1} parent=1 // pred_check_branch
      %69 = sbr.rel (0) target = $region17
    $region16: #{tpu_custom_call.1} parent=1 // pred_region
      %70 = dma.done [#allocation3], 128
    $region17: #{tpu_custom_call.1} parent=1 // pred_fallthru
      _
    %71 = vsyncpa [#allocation3], 1

</llo_original>
